<compile_context>
chip_gen: v7x
topology: tpu7x:2x2x1
jax: 0.10.0
libtpu: 0.0.40
codegen_flags: <defaults>
</compile_context>

<pallas_src>
import functools

import jax
import jax.numpy as jnp
from jax.experimental import pallas as pl
from jax.experimental.pallas import tpu as pltpu

_NEG_PAD = -1e30  # bias value for padded class lanes (finite -> no inf*0 NaNs)


def _round_up(x, m):
    return ((x + m - 1) // m) * m


def _kernel_with_loss(x_ref, w_ref, b_ref, tag_ref, out_ref, loss_ref,
                      *, tile_b, batch_total):
    # x_ref:   (TB, F)       compute dtype (bf16 or f32)
    # w_ref:   (Cpad, F)     compute dtype, nn.Linear layout, zero-padded rows
    # b_ref:   (1, Cpad)     f32, padded lanes = _NEG_PAD
    # tag_ref: (TB, 1)       int32
    # out_ref: (TB, Cpad)    f32 logits slab (lane-dense)
    # loss_ref:(8, 128)      f32, whole block filled with this tile's loss sum
    x = x_ref[...]
    w = w_ref[...]
    b = b_ref[...]

    # (TB, F) @ (Cpad, F)^T on the MXU, f32 accumulate; no wrapper transpose.
    logits = jax.lax.dot_general(
        x, w, (((1,), (1,)), ((), ())),
        preferred_element_type=jnp.float32) + b
    out_ref[...] = logits.astype(out_ref.dtype)

    # Stable log-softmax cross-entropy, summed over valid rows of this tile.
    tag = tag_ref[...]                                          # (TB, 1)
    m = jnp.max(logits, axis=-1, keepdims=True)                 # (TB, 1)
    lse = m + jnp.log(jnp.sum(jnp.exp(logits - m), axis=-1, keepdims=True))
    col = jax.lax.broadcasted_iota(jnp.int32, logits.shape, 1)  # (TB, Cpad)
    onehot = (col == tag).astype(jnp.float32)
    picked = jnp.sum(logits * onehot, axis=-1, keepdims=True)   # (TB, 1)

    # Mask rows that are batch padding (global row >= B).
    row = jax.lax.broadcasted_iota(jnp.int32, (tile_b, 1), 0)
    valid = ((pl.program_id(0) * tile_b + row) < batch_total).astype(jnp.float32)

    part = jnp.sum((lse - picked) * valid)                      # scalar partial sum
    loss_ref[...] = jnp.full(loss_ref.shape, part, dtype=loss_ref.dtype)


def _kernel_no_loss(x_ref, w_ref, b_ref, out_ref):
    logits = jax.lax.dot_general(
        x_ref[...], w_ref[...], (((1,), (1,)), ((), ())),
        preferred_element_type=jnp.float32) + b_ref[...]
    out_ref[...] = logits.astype(out_ref.dtype)


def deal_embed_forward(data, weight, bias, tag=None, *,
                       compute_dtype=jnp.bfloat16, tile_b=512):
    """Pallas implementation of deal_embed.forward.

    data:   (B, bert_out_length)
    weight: (bin_number, bert_out_length)  -- nn.Linear convention (no transpose)
    bias:   (bin_number,)
    tag:    optional (B,) int class indices
    returns (out, loss): out (B, bin_number) f32, loss scalar (0.0 if tag is None)
    """
    B, F = data.shape
    C = weight.shape[0]

    Cpad = max(_round_up(C, 128), 128)        # lane-dense output width
    TB = min(tile_b, _round_up(B, 8))         # batch tile (sublane-aligned)
    Bpad = _round_up(B, TB)
    num_tiles = Bpad // TB

    # ---- glue: pad/cast (TODO(synk): hoist weight/bias padding to param init
    # time in a real training loop so it isn't re-done every call). ----
    x = data.astype(compute_dtype)
    if Bpad != B:
        x = jnp.pad(x, ((0, Bpad - B), (0, 0)))
    w = weight.astype(compute_dtype)
    if Cpad != C:
        w = jnp.pad(w, ((0, Cpad - C), (0, 0)))          # zero rows for pad classes
    b2d = jnp.full((1, Cpad), _NEG_PAD, jnp.float32).at[0, :C].set(
        bias.astype(jnp.float32))

    x_spec = pl.BlockSpec((TB, F), lambda i: (i, 0))
    w_spec = pl.BlockSpec((Cpad, F), lambda i: (0, 0))   # VMEM-resident
    b_spec = pl.BlockSpec((1, Cpad), lambda i: (0, 0))   # VMEM-resident
    out_spec = pl.BlockSpec((TB, Cpad), lambda i: (i, 0))
    cparams = pltpu.CompilerParams(dimension_semantics=("parallel",))

    if tag is not None:
        tag2d = tag.astype(jnp.int32).reshape(B, 1)
        if Bpad != B:
            tag2d = jnp.pad(tag2d, ((0, Bpad - B), (0, 0)))

        kernel = functools.partial(_kernel_with_loss, tile_b=TB, batch_total=B)
        out_pad, loss_parts = pl.pallas_call(
            kernel,
            out_shape=(
                jax.ShapeDtypeStruct((Bpad, Cpad), jnp.float32),
                jax.ShapeDtypeStruct((num_tiles * 8, 128), jnp.float32),
            ),
            grid=(num_tiles,),
            in_specs=[x_spec, w_spec, b_spec,
                      pl.BlockSpec((TB, 1), lambda i: (i, 0))],
            out_specs=(out_spec,
                       pl.BlockSpec((8, 128), lambda i: (i, 0))),
            compiler_params=cparams,
        )(x, w, b2d, tag2d)
        # Each (8,128) block is filled with its tile's partial sum; take one
        # value per tile and finish the mean with the *global* batch size.
        loss = jnp.sum(loss_parts[::8, 0]) / jnp.float32(B)
    else:
        out_pad = pl.pallas_call(
            _kernel_no_loss,
            out_shape=jax.ShapeDtypeStruct((Bpad, Cpad), jnp.float32),
            grid=(num_tiles,),
            in_specs=[x_spec, w_spec, b_spec],
            out_specs=out_spec,
            compiler_params=cparams,
        )(x, w, b2d)
        loss = jnp.float32(0.0)

    return out_pad[:B, :C], loss


if __name__ == "__main__":
    # Small, deterministic synthetic setup.
    B = 8                     # batch
    bert_out_length = 32      # input feature width
    bin_number = 16           # config.bin_number (number of classes)

    key = jax.random.PRNGKey(0)
    k_x, k_w, k_b, k_t = jax.random.split(key, 4)

    data = jax.random.normal(k_x, (B, bert_out_length), dtype=jnp.float32)
    bound = 1.0 / (bert_out_length ** 0.5)
    weight = jax.random.uniform(k_w, (bin_number, bert_out_length),
                                minval=-bound, maxval=bound, dtype=jnp.float32)
    bias = jax.random.uniform(k_b, (bin_number,),
                              minval=-bound, maxval=bound, dtype=jnp.float32)
    tag = jax.random.randint(k_t, (B,), 0, bin_number, dtype=jnp.int32)

    # Pure-JAX f32 reference.
    ref_logits = jnp.einsum("bf,cf->bc", data, weight,
                            precision=jax.lax.Precision.HIGHEST) + bias
    ref_lse = jax.scipy.special.logsumexp(ref_logits, axis=-1)
    ref_loss = jnp.mean(ref_lse - ref_logits[jnp.arange(B), tag])

    # f32 compute path: tight check.
    out32, loss32 = deal_embed_forward(data, weight, bias, tag,
                                       compute_dtype=jnp.float32)
    out32 = jax.block_until_ready(out32)
    loss32 = jax.block_until_ready(loss32)
    assert out32.shape == (B, bin_number)
    assert jnp.allclose(out32, ref_logits, atol=1e-4, rtol=1e-4)
    assert jnp.allclose(loss32, ref_loss, atol=1e-4, rtol=1e-4)

    # Default bf16 matmul path: looser check against the f32 reference.
    out, loss = deal_embed_forward(data, weight, bias, tag)
    out = jax.block_until_ready(out)
    loss = jax.block_until_ready(loss)
    assert jnp.allclose(out, ref_logits, atol=3e-2, rtol=3e-2)
    assert jnp.allclose(loss, ref_loss, atol=3e-2, rtol=3e-2)

    # tag=None path (loss == 0, no loss math compiled).
    out2, loss2 = deal_embed_forward(data, weight, bias, None)
    jax.block_until_ready(out2)
    assert out2.shape == (B, bin_number)
    assert float(loss2) == 0.0

    print("KERNEL_OK")
</pallas_src>

<mosaic_0001>
module attributes {stable_mosaic.version = 11 : i64} {
  func.func @_kernel_with_loss(%arg0: i32, %arg1: memref<8x32xf32, #tpu.memory_space<vmem>>, %arg2: memref<128x32xf32, #tpu.memory_space<vmem>>, %arg3: memref<1x128xf32, #tpu.memory_space<vmem>>, %arg4: memref<8x1xi32, #tpu.memory_space<vmem>>, %arg5: memref<8x128xf32, #tpu.memory_space<vmem>>, %arg6: memref<8x128xf32, #tpu.memory_space<vmem>>) attributes {dimension_semantics = [#tpu.dimension_semantics<parallel>], iteration_bounds = array<i64: 1>, scalar_prefetch = 0 : i64, scratch_operands = 0 : i64, tpu.core_type = #tpu.core_type<tc>, window_params = [{transform_indices = @transform_0, window_bounds = array<i64: 8, 32>}, {pipeline_mode = #tpu.pipeline_mode<synchronous>, transform_indices = @transform_1, window_bounds = array<i64: 128, 32>}, {pipeline_mode = #tpu.pipeline_mode<synchronous>, transform_indices = @transform_2, window_bounds = array<i64: 1, 128>}, {transform_indices = @transform_3, window_bounds = array<i64: 8, 1>}, {transform_indices = @transform_4, window_bounds = array<i64: 8, 128>}, {transform_indices = @transform_5, window_bounds = array<i64: 8, 128>}]} {
    %c0 = arith.constant 0 : index
    %c0_0 = arith.constant 0 : index
    %0 = vector.load %arg1[%c0, %c0_0] : memref<8x32xf32, #tpu.memory_space<vmem>>, vector<8x32xf32>
    %c0_1 = arith.constant 0 : index
    %c0_2 = arith.constant 0 : index
    %1 = vector.load %arg2[%c0_1, %c0_2] : memref<128x32xf32, #tpu.memory_space<vmem>>, vector<128x32xf32>
    %c0_3 = arith.constant 0 : index
    %c0_4 = arith.constant 0 : index
    %2 = vector.load %arg3[%c0_3, %c0_4] : memref<1x128xf32, #tpu.memory_space<vmem>>, vector<1x128xf32>
    %cst = arith.constant dense<0.000000e+00> : vector<8x128xf32>
    %3 = tpu.matmul %0, %1, %cst {dimension_numbers = #tpu.dot_dimension_numbers<[1], [1], [0], [0], [0, 0, 1, 0], [], []>} : vector<8x32xf32>, vector<128x32xf32>, vector<8x128xf32> -> vector<8x128xf32>
    %4 = vector.broadcast %2 : vector<1x128xf32> to vector<8x128xf32>
    %5 = arith.addf %3, %4 : vector<8x128xf32>
    %c0_5 = arith.constant 0 : index
    %c0_6 = arith.constant 0 : index
    %6 = vector.load %arg5[%c0_5, %c0_6] : memref<8x128xf32, #tpu.memory_space<vmem>>, vector<8x128xf32>
    tpu.vector_store %arg5[%c0_5, %c0_6], %5 {strides = array<i32>} : memref<8x128xf32, #tpu.memory_space<vmem>>, vector<8x128xf32>,
    %c0_7 = arith.constant 0 : index
    %c0_8 = arith.constant 0 : index
    %7 = vector.load %arg4[%c0_7, %c0_8] : memref<8x1xi32, #tpu.memory_space<vmem>>, vector<8x1xi32>
    %cst_9 = arith.constant dense<0xFF800000> : vector<8xf32>
    %8 = vector.multi_reduction <maximumf>, %5, %cst_9 [1] : vector<8x128xf32> to vector<8xf32>
    %9 = vector.shape_cast %8 : vector<8xf32> to vector<8x1xf32>
    %10 = vector.broadcast %9 : vector<8x1xf32> to vector<8x128xf32>
    %11 = arith.subf %5, %10 : vector<8x128xf32>
    %12 = math.exp %11 : vector<8x128xf32>
    %cst_10 = arith.constant dense<0.000000e+00> : vector<8xf32>
    %13 = vector.multi_reduction <add>, %12, %cst_10 [1] : vector<8x128xf32> to vector<8xf32>
    %14 = vector.shape_cast %13 : vector<8xf32> to vector<8x1xf32>
    %15 = math.log %14 : vector<8x1xf32>
    %16 = arith.addf %9, %15 : vector<8x1xf32>
    %17 = tpu.iota {dimensions = array<i32: 1>} : vector<8x128xi32>
    %18 = vector.broadcast %7 : vector<8x1xi32> to vector<8x128xi32>
    %19 = arith.cmpi eq, %17, %18 : vector<8x128xi32>
    %20 = arith.extui %19 : vector<8x128xi1> to vector<8x128xi32>
    %21 = arith.sitofp %20 : vector<8x128xi32> to vector<8x128xf32>
    %22 = arith.mulf %5, %21 : vector<8x128xf32>
    %cst_11 = arith.constant dense<0.000000e+00> : vector<8xf32>
    %23 = vector.multi_reduction <add>, %22, %cst_11 [1] : vector<8x128xf32> to vector<8xf32>
    %24 = vector.shape_cast %23 : vector<8xf32> to vector<8x1xf32>
    %25 = tpu.iota {dimensions = array<i32: 0>} : vector<8x1xi32>
    %c8_i32 = arith.constant 8 : i32
    %26 = arith.muli %arg0, %c8_i32 : i32
    %27 = vector.broadcast %26 : i32 to vector<8x1xi32>
    %28 = arith.addi %27, %25 : vector<8x1xi32>
    %c8_i32_12 = arith.constant 8 : i32
    %29 = vector.broadcast %c8_i32_12 : i32 to vector<8x1xi32>
    %30 = arith.cmpi slt, %28, %29 : vector<8x1xi32>
    %31 = arith.extui %30 : vector<8x1xi1> to vector<8x1xi32>
    %32 = arith.sitofp %31 : vector<8x1xi32> to vector<8x1xf32>
    %33 = arith.subf %16, %24 : vector<8x1xf32>
    %34 = arith.mulf %33, %32 : vector<8x1xf32>
    %35 = vector.shape_cast %34 : vector<8x1xf32> to vector<1x8x1xf32>
    %cst_13 = arith.constant dense<0.000000e+00> : vector<1xf32>
    %36 = vector.multi_reduction <add>, %35, %cst_13 [1, 2] : vector<1x8x1xf32> to vector<1xf32>
    %37 = vector.shape_cast %36 : vector<1xf32> to vector<1x1x1xf32>
    %38 = vector.extract %37[0, 0, 0] : f32 from vector<1x1x1xf32>
    %39 = vector.broadcast %38 : f32 to vector<8x128xf32>
    %c0_14 = arith.constant 0 : index
    %c0_15 = arith.constant 0 : index
    %40 = vector.load %arg6[%c0_14, %c0_15] : memref<8x128xf32, #tpu.memory_space<vmem>>, vector<8x128xf32>
    tpu.vector_store %arg6[%c0_14, %c0_15], %39 {strides = array<i32>} : memref<8x128xf32, #tpu.memory_space<vmem>>, vector<8x128xf32>,
    return
  }
  func.func @transform_0(%arg0: i32) -> (i32, i32) {
    %c0_i32 = arith.constant 0 : i32
    %c0_i32_0 = arith.constant 0 : i32
    return %arg0, %c0_i32 : i32, i32
  }
  func.func @transform_1(%arg0: i32) -> (i32, i32) {
    %c0_i32 = arith.constant 0 : i32
    %c0_i32_0 = arith.constant 0 : i32
    %c0_i32_1 = arith.constant 0 : i32
    return %c0_i32, %c0_i32_0 : i32, i32
  }
  func.func @transform_2(%arg0: i32) -> (i32, i32) {
    %c0_i32 = arith.constant 0 : i32
    %c0_i32_0 = arith.constant 0 : i32
    %c0_i32_1 = arith.constant 0 : i32
    return %c0_i32, %c0_i32_0 : i32, i32
  }
  func.func @transform_3(%arg0: i32) -> (i32, i32) {
    %c0_i32 = arith.constant 0 : i32
    %c0_i32_0 = arith.constant 0 : i32
    return %arg0, %c0_i32 : i32, i32
  }
  func.func @transform_4(%arg0: i32) -> (i32, i32) {
    %c0_i32 = arith.constant 0 : i32
    %c0_i32_0 = arith.constant 0 : i32
    return %arg0, %c0_i32 : i32, i32
  }
  func.func @transform_5(%arg0: i32) -> (i32, i32) {
    %c0_i32 = arith.constant 0 : i32
    %c0_i32_0 = arith.constant 0 : i32
    return %arg0, %c0_i32 : i32, i32
  }
}

</mosaic_0001>

<llo_original>
// kernel: tpu_custom_call.1
$region0: #{tpu_custom_call.1}
  #allocation0 [shape = 'u32[]', space=smem, size = 0x4, offset = 0x4, fixed_abs, tag = 'smem constant byte address 0x4 - core index']
  #allocation1 [shape = 'u32[144,128]{1,0:T(1,128)}', space=vmem, size = 0x12000, scoped, tag = 'internal scratch']
  %s0 = inlined_call_operand.vmem [shape: f32[8,32], index: 0, kind: input, shape index: {}]
  %s1 = inlined_call_operand.vmem [shape: f32[128,32], index: 1, kind: input, shape index: {}]
  %s2 = inlined_call_operand.vmem [shape: f32[1,128], index: 2, kind: input, shape index: {}]
  %s3 = inlined_call_operand.vmem [shape: s32[8,1], index: 3, kind: input, shape index: {}]
  %s4 = inlined_call_operand.hbm [shape: f32[8,128], index: 4, kind: output, shape index: {0}]
  %s5 = inlined_call_operand.hbm [shape: f32[8,128], index: 5, kind: output, shape index: {1}]
  %6 = xla_tuple %s4, %s5
  %s7 = sld [smem:[#allocation0]]
  $region34: #{tpu_custom_call.1} parent=0
    _
  %s9 = ssub.s32 1, %s7
  %s10 = scalar_select 0, %s9, %s7
  $region1: #{tpu_custom_call.1} parent=0
    #allocation2 [shape = 'u8[4096]{0}', space=vmem, size = 0x1000, scoped, tag = 'output window, operand 0, single buffered']
    #allocation3 [shape = 's32[1]{0}', space=sflag, size = 0x4, scoped, tag = 'scoped memory for tpu_custom_call.1']
    #allocation4 [shape = 'u8[4096]{0}', space=vmem, size = 0x1000, scoped, tag = 'output window, operand 1, single buffered']
    #allocation5 [shape = 's32[1]{0}', space=sflag, size = 0x4, scoped, tag = 'scoped memory for tpu_custom_call.1']
    %11 = vsyncpa [#allocation3], 0
    %12 = vsyncpa [#allocation5], 0
    // Predicated region
    $region2: #{tpu_custom_call.1} parent=1 // pred_check
      _
    $region3: #{tpu_custom_call.1} parent=1 // pred_check_branch
      %14 = sbr.rel (0) target = $region5
    $region4: #{tpu_custom_call.1} parent=1 // pred_region
      _
    $region5: #{tpu_custom_call.1} parent=1 // pred_fallthru
      _
    // Predicated region
    $region6: #{tpu_custom_call.1} parent=1 // pred_check
      _
    $region7: #{tpu_custom_call.1} parent=1 // pred_check_branch
      %16 = sbr.rel (0) target = $region9
    $region8: #{tpu_custom_call.1} parent=1 // pred_region
      _
    $region9: #{tpu_custom_call.1} parent=1 // pred_fallthru
      _
    // Predicated region
    $region10: #{tpu_custom_call.1} parent=1 // pred_check
      _
    $region11: #{tpu_custom_call.1} parent=1 // pred_check_branch
      %18 = sbr.rel (0) target = $region13
    $region12: #{tpu_custom_call.1} parent=1 // pred_region
      _
    $region13: #{tpu_custom_call.1} parent=1 // pred_fallthru
      _
    // Predicated region
    $region14: #{tpu_custom_call.1} parent=1 // pred_check
      _
    $region15: #{tpu_custom_call.1} parent=1 // pred_check_branch
      %20 = sbr.rel (0) target = $region17
    $region16: #{tpu_custom_call.1} parent=1 // pred_region
      _
    $region17: #{tpu_custom_call.1} parent=1 // pred_fallthru
      _
    %v21 = vld [vmem:[%s0] sm:$0xff]
    %v22 = vld [vmem:[%s1] sm:$0xff]
    %v23 = vld [vmem:[%s1 + $0x8] sm:$0xff]
    %v24 = vld [vmem:[%s1 + $0x10] sm:$0xff]
    %v25 = vld [vmem:[%s1 + $0x18] sm:$0xff]
    %v26 = vld [vmem:[%s1 + $0x20] sm:$0xff]
    %v27 = vld [vmem:[%s1 + $0x28] sm:$0xff]
    %v28 = vld [vmem:[%s1 + $0x30] sm:$0xff]
    %v29 = vld [vmem:[%s1 + $0x38] sm:$0xff]
    %v30 = vld [vmem:[%s1 + $0x40] sm:$0xff]
    %v31 = vld [vmem:[%s1 + $0x48] sm:$0xff]
    %v32 = vld [vmem:[%s1 + $0x50] sm:$0xff]
    %v33 = vld [vmem:[%s1 + $0x58] sm:$0xff]
    %v34 = vld [vmem:[%s1 + $0x60] sm:$0xff]
    %v35 = vld [vmem:[%s1 + $0x68] sm:$0xff]
    %v36 = vld [vmem:[%s1 + $0x70] sm:$0xff]
    %v37 = vld [vmem:[%s1 + $0x78] sm:$0xff]
    %v38 = vld [vmem:[%s2] sm:$0x1]
    %v40 = vlaneseq
    %v41 = vshrl.u32 %v40, 7
    %v42 = vsub.s32 0, %v41
    %v43 = vrot.slane %v38, %v42
    %vm45 = vcmask 261120
    %v47 = vsel %vm45, %v21, 0
    %v50 = vsel %vm45, %v22, 0
    %v53 = vsel %vm45, %v23, 0
    %v56 = vsel %vm45, %v24, 0
    %v59 = vsel %vm45, %v25, 0
    %v62 = vsel %vm45, %v26, 0
    %v65 = vsel %vm45, %v27, 0
    %v68 = vsel %vm45, %v28, 0
    %v71 = vsel %vm45, %v29, 0
    %v74 = vsel %vm45, %v30, 0
    %v77 = vsel %vm45, %v31, 0
    %v80 = vsel %vm45, %v32, 0
    %v83 = vsel %vm45, %v33, 0
    %v86 = vsel %vm45, %v34, 0
    %v89 = vsel %vm45, %v35, 0
    %v92 = vsel %vm45, %v36, 0
    %v95 = vsel %vm45, %v37, 0
    %97 = vmatprep.subr.mxu0 0.0
    %98 = vmatpush1.xpose.msra.mxu0 %v50
    %99 = vmatprep.subr.mxu0 0.0
    %100 = vmatpush1.xpose.msra.mxu0 %v53
    %101 = vmatprep.subr.mxu0 0.0
    %102 = vmatpush1.xpose.msra.mxu0 %v56
    %103 = vmatprep.subr.mxu0 0.0
    %104 = vmatpush1.xpose.msra.mxu0 %v59
    %105 = vmatprep.subr.mxu0 0.0
    %106 = vmatpush1.xpose.msra.mxu0 %v62
    %107 = vmatprep.subr.mxu0 0.0
    %108 = vmatpush1.xpose.msra.mxu0 %v65
    %109 = vmatprep.subr.mxu0 0.0
    %110 = vmatpush1.xpose.msra.mxu0 %v68
    %111 = vmatprep.subr.mxu0 0.0
    %112 = vmatpush1.xpose.msra.mxu0 %v71
    %113 = vmatprep.subr.mxu0 0.0
    %114 = vmatpush1.xpose.msra.mxu0 %v74
    %115 = vmatprep.subr.mxu0 0.0
    %116 = vmatpush1.xpose.msra.mxu0 %v77
    %117 = vmatprep.subr.mxu0 0.0
    %118 = vmatpush1.xpose.msra.mxu0 %v80
    %119 = vmatprep.subr.mxu0 0.0
    %120 = vmatpush1.xpose.msra.mxu0 %v83
    %121 = vmatprep.subr.mxu0 0.0
    %122 = vmatpush1.xpose.msra.mxu0 %v86
    %123 = vmatprep.subr.mxu0 0.0
    %124 = vmatpush1.xpose.msra.mxu0 %v89
    %125 = vmatprep.subr.mxu0 0.0
    %126 = vmatpush1.xpose.msra.mxu0 %v92
    %127 = vmatprep.subr.mxu0 0.0
    %128 = vmatpush1.xpose.msra.mxu0 %v95
    %129 = vmatprep.subr.mxu0 0.0
    %130 = vmatpush1.xpose.msra.mxu0 0.0
    %131 = vmatprep.subr.mxu0 0.0
    %132 = vmatpush1.xpose.msra.mxu0 0.0
    %133 = vmatprep.subr.mxu0 0.0
    %134 = vmatpush1.xpose.msra.mxu0 0.0
    %135 = vmatprep.subr.mxu0 0.0
    %136 = vmatpush1.xpose.msra.mxu0 0.0
    %137 = vmatprep.subr.mxu0 0.0
    %138 = vmatpush1.xpose.msra.mxu0 0.0
    %139 = vmatprep.subr.mxu0 0.0
    %140 = vmatpush1.xpose.msra.mxu0 0.0
    %141 = vmatprep.subr.mxu0 0.0
    %142 = vmatpush1.xpose.msra.mxu0 0.0
    %143 = vmatprep.subr.mxu0 0.0
    %144 = vmatpush1.xpose.msra.mxu0 0.0
    %145 = vmatprep.subr.mxu0 0.0
    %146 = vmatpush1.xpose.msra.mxu0 0.0
    %147 = vmatprep.subr.mxu0 0.0
    %148 = vmatpush1.xpose.msra.mxu0 0.0
    %149 = vmatprep.subr.mxu0 0.0
    %150 = vmatpush1.xpose.msra.mxu0 0.0
    %151 = vmatprep.subr.mxu0 0.0
    %152 = vmatpush1.xpose.msra.mxu0 0.0
    %153 = vmatprep.subr.mxu0 0.0
    %154 = vmatpush1.xpose.msra.mxu0 0.0
    %155 = vmatprep.subr.mxu0 0.0
    %156 = vmatpush1.xpose.msra.mxu0 0.0
    %157 = vmatprep.subr.mxu0 0.0
    %158 = vmatpush1.xpose.msra.mxu0 0.0
    %159 = vmatprep.subr.mxu0 0.0
    %160 = vmatpush1.xpose.msra.mxu0 0.0
    %161 = vmatprep.mubr.f32.mxu0 0.0
    %162 = vmatmul.mubr.f32.gmra.mrb[0].mxu0 %v47
    %v163 = vpop.f32.mrb[0].mxu0
    %v164 = vadd.f32 %v43, %v163
    %v165 = vpop.f32.mrb[0].mxu0
    %166 = vdwg.mxu0
    %167 = vst [vmem:[#allocation2] sm:$0xff] %v164
    %v168 = vld [vmem:[%s3] sm:$0xff]
    %169 = vmax.xlane.f32.xlu0 %v164
    %v170 = vpop.xlane.xlu0 %169
    %v171 = vsub.f32 %v164, %v170
    %v172 = vmul.f32 %v171, 1.442695
    %v173 = vpow.pop %v172
    %174 = vadd.xlane.f32.xlu0 %v173
    %v175 = vpop.xlane.xlu0 %174
    %v176 = vlog2.pop %v175
    %v177 = vmul.f32 %v176, 0.6931472
    %v178 = vadd.f32 %v170, %v177
    %v179 = vlaneseq
    %v180 = vand.u32 %v179, 127
    %181 = vset.pattern.permute.xlu0 0
    %182 = vperm.xlu0 %181, %v168
    %v183 = vpop.permute.xlu0 %182
    %vm184 = vcmp.eq.s32.totalorder %v180, %v183
    %v185 = vsel %vm184, 1, 0
    %v186 = vcvt.s32.f32 %v185
    %v187 = vmul.f32 %v164, %v186
    %188 = vadd.xlane.f32.xlu0 %v187
    %v189 = vpop.xlane.xlu0 %188
    %v190 = vlaneseq
    %v191 = vshrl.u32 %v190, 7
    %s192 = smul.u32 0, 8
    %v193 = vstv %s192
    %v194 = vadd.s32 %v193, %v191
    %vm195 = vcmp.lt.s32.totalorder %v194, 8
    %v196 = vsel %vm195, 1, 0
    %v197 = vcvt.s32.f32 %v196
    %v198 = vsub.f32 %v178, %v189
    %v199 = vmul.f32 %v198, %v197
    %vm200 = vcmask 7168
    %v201 = vsel %vm200, %v199, 0.0
    %202 = vadd.xlane.f32.xlu0 %v201
    %v203 = vpop.xlane.xlu0 %202
    %v204 = vrot.slane %v203, 4
    %v205 = vadd.f32 %v203, %v204
    %v206 = vrot.slane %v205, 2
    %v207 = vadd.f32 %v205, %v206
    %v208 = vrot.slane %v207, 1
    %v209 = vadd.f32 %v207, %v208
    %s210 = vtos %v209
    %v211 = vstv %s210
    %212 = vst [vmem:[#allocation4] sm:$0xff] %v211
    // Predicated region
    $region18: #{tpu_custom_call.1} parent=1 // pred_check
      _
    $region19: #{tpu_custom_call.1} parent=1 // pred_check_branch
      %214 = sbr.rel (0) target = $region21
    $region20: #{tpu_custom_call.1} parent=1 // pred_region
      %s216 = ssub.s32 128, 128
      %217 = vsyncadd [#allocation3], %s216
      %s219 = sshll.u32 [#allocation2], 4
      %s220 = int_to_ptr.vmem [resolvable:$true] %s219
      %222 = dma.vmem_to_hbm [thread:$0]  %s220, 128, %s4, [#allocation3]
    $region21: #{tpu_custom_call.1} parent=1 // pred_fallthru
      _
    // Predicated region
    $region22: #{tpu_custom_call.1} parent=1 // pred_check
      _
    $region23: #{tpu_custom_call.1} parent=1 // pred_check_branch
      %224 = sbr.rel (0) target = $region25
    $region24: #{tpu_custom_call.1} parent=1 // pred_region
      %s226 = ssub.s32 128, 128
      %227 = vsyncadd [#allocation5], %s226
      %s229 = sshll.u32 [#allocation4], 4
      %s230 = int_to_ptr.vmem [resolvable:$true] %s229
      %232 = dma.vmem_to_hbm [thread:$0]  %s230, 128, %s5, [#allocation5]
    $region25: #{tpu_custom_call.1} parent=1 // pred_fallthru
      _
    // Predicated region
    $region26: #{tpu_custom_call.1} parent=1 // pred_check
      _
    $region27: #{tpu_custom_call.1} parent=1 // pred_check_branch
      %234 = sbr.rel (0) target = $region29
    $region28: #{tpu_custom_call.1} parent=1 // pred_region
      %235 = dma.done [#allocation3], 128
    $region29: #{tpu_custom_call.1} parent=1 // pred_fallthru
      _
    // Predicated region
    $region30: #{tpu_custom_call.1} parent=1 // pred_check
      _
    $region31: #{tpu_custom_call.1} parent=1 // pred_check_branch
      %237 = sbr.rel (0) target = $region33
    $region32: #{tpu_custom_call.1} parent=1 // pred_region
      %238 = dma.done [#allocation5], 128
    $region33: #{tpu_custom_call.1} parent=1 // pred_fallthru
      _
    %239 = vsyncpa [#allocation3], 1
    %240 = vsyncpa [#allocation5], 1

</llo_original>
